<compile_context>
chip_gen: v7x
topology: tpu7x:2x2x1
jax: 0.10.0
libtpu: 0.0.40
codegen_flags: <defaults>
</compile_context>

<pallas_src>
import functools
import math

import jax
import jax.numpy as jnp
from jax import lax
from jax.experimental import pallas as pl
from jax.experimental.pallas import tpu as pltpu

_INV_SQRT2 = 1.0 / math.sqrt(2.0)


def _round_up(x, m):
    return ((x + m - 1) // m) * m


def _bert_intermediate_kernel(x_ref, w_ref, b_ref, o_ref, *, approximate_gelu):
    # x_ref: (tm, H) in native dtype (f32) -> cast to the weight dtype (bf16)
    # inside the kernel so the wrapper never materializes a bf16 copy of X.
    x = x_ref[...].astype(w_ref.dtype)
    acc = jnp.dot(x, w_ref[...], preferred_element_type=jnp.float32)  # f32 MXU acc
    acc = acc + b_ref[...]                                            # f32 bias, bcast rows
    if approximate_gelu:
        # tanh-approx GELU: transcendental runs on the EUP slot (free vs. VALU).
        out = jax.nn.gelu(acc, approximate=True)
    else:
        # exact GELU matching torch.nn.GELU() default: x * (0.5 + 0.5*erf(x/sqrt(2)))
        out = acc * (0.5 + 0.5 * lax.erf(acc * _INV_SQRT2))
    o_ref[...] = out.astype(o_ref.dtype)


def _vmem_limit_bytes():
    """Per-generation scoped-VMEM limit with compiler headroom."""
    try:
        phys = int(pltpu.get_tpu_info().vmem_capacity_bytes)
    except Exception:
        phys = 64 << 20  # conservative fallback: v7x per-TensorCore VMEM
    # ~85% of physical: ~54 MiB on v7x (64 MiB/TC), ~108 MiB on v5e/v6e (128 MiB).
    return max(32 << 20, int(phys * 0.85))


def _tile_bytes(tm, tn, H, out_itemsize):
    # Double-buffered per-step footprint (x kept in f32, weight in bf16).
    return (2 * tm * H * 4          # activation tile
            + 2 * H * tn * 2        # weight tile (resident when index constant)
            + 2 * tn * 4            # bias tile
            + 2 * tm * tn * out_itemsize)


def _choose_tiles(M, H, I, out_itemsize, budget):
    tm_cap = max(16, _round_up(M, 16))
    tm_candidates = (1024, 512, 256, 128, 64, 32, 16)
    # Preferred: weight-stationary (tn = I) -> X streamed from HBM exactly once.
    for tm in tm_candidates:
        tm_eff = min(tm, tm_cap)
        if _tile_bytes(tm_eff, I, H, out_itemsize) <= budget:
            return tm_eff, I
    # Fallback for very large H*I: also tile the intermediate dim.
    for tn in (2048, 1024, 512, 256, 128):
        tn_eff = min(tn, I)
        for tm in tm_candidates:
            tm_eff = min(tm, tm_cap)
            if _tile_bytes(tm_eff, tn_eff, H, out_itemsize) <= budget:
                return tm_eff, tn_eff
    return min(16, tm_cap), min(128, I)  # last resort


def bert_intermediate(hidden_states, weight, bias, *, out_dtype=None,
                      compute_dtype=jnp.bfloat16, approximate_gelu=False,
                      tm=None, tn=None):
    """hidden_states: [B, S, H]; weight: [H, I]; bias: [I] -> [B, S, I]."""
    B, S, H = hidden_states.shape
    Hw, I = weight.shape
    assert Hw == H, f"weight shape {weight.shape} incompatible with hidden size {H}"
    M = B * S
    out_dtype = hidden_states.dtype if out_dtype is None else out_dtype
    out_itemsize = jnp.dtype(out_dtype).itemsize

    vmem_limit = _vmem_limit_bytes()
    auto_tm, auto_tn = _choose_tiles(M, H, I, out_itemsize,
                                     budget=int(vmem_limit * 0.8))
    tm = auto_tm if tm is None else tm
    tn = auto_tn if tn is None else min(tn, I)
    weight_stationary = (tn == I)

    # X stays in its native dtype (cast in-kernel); weight pre-cast once.
    x2d = hidden_states.reshape(M, H)
    w = weight.astype(compute_dtype)
    b2d = bias.reshape(1, I).astype(jnp.float32)

    kernel = functools.partial(_bert_intermediate_kernel,
                               approximate_gelu=approximate_gelu)

    if weight_stationary:
        # 1-D grid over row tiles; weight/bias block index constant -> resident
        # in VMEM; X read exactly once.  Ragged last M tile handled by masking.
        grid = (pl.cdiv(M, tm),)
        in_specs = [
            pl.BlockSpec((tm, H), lambda i: (i, 0)),
            pl.BlockSpec((H, I), lambda i: (0, 0)),
            pl.BlockSpec((1, I), lambda i: (0, 0)),
        ]
        out_specs = pl.BlockSpec((tm, I), lambda i: (i, 0))
        dim_sem = ("parallel",)          # v7x megacore: split row tiles over TCs
        x_passes = 1
    else:
        # Column tile outermost, row tile innermost so each weight column block
        # stays resident across the whole M sweep.
        grid = (pl.cdiv(I, tn), pl.cdiv(M, tm))
        in_specs = [
            pl.BlockSpec((tm, H), lambda j, i: (i, 0)),
            pl.BlockSpec((H, tn), lambda j, i: (0, j)),
            pl.BlockSpec((1, tn), lambda j, i: (0, j)),
        ]
        out_specs = pl.BlockSpec((tm, tn), lambda j, i: (i, j))
        dim_sem = ("parallel", "parallel")
        x_passes = pl.cdiv(I, tn)

    cost = pl.CostEstimate(
        flops=2 * M * H * I,
        transcendentals=M * I,                       # one erf/tanh per output element
        bytes_accessed=(x2d.size * x2d.dtype.itemsize * x_passes
                        + w.size * w.dtype.itemsize
                        + b2d.size * 4
                        + M * I * out_itemsize),
    )

    out2d = pl.pallas_call(
        kernel,
        out_shape=jax.ShapeDtypeStruct((M, I), out_dtype),
        grid_spec=pltpu.PrefetchScalarGridSpec(
            num_scalar_prefetch=0,
            grid=grid,
            in_specs=in_specs,
            out_specs=out_specs,
        ),
        compiler_params=pltpu.CompilerParams(
            dimension_semantics=dim_sem,
            vmem_limit_bytes=vmem_limit,
        ),
        cost_estimate=cost,
    )(x2d, w, b2d)

    return out2d.reshape(B, S, I)


if __name__ == "__main__":
    # Small config: hidden_size=32, intermediate_size=128, batch=2, seq=8.
    batch, seq, hidden, intermediate = 2, 8, 32, 128

    key = jax.random.PRNGKey(0)
    kx, kw, kb, kx2 = jax.random.split(key, 4)

    hidden_states = jax.random.normal(kx, (batch, seq, hidden), dtype=jnp.float32)
    # nn.Linear(hidden, intermediate): torch weight is [I, H]; we store transposed [H, I].
    weight = jax.random.normal(kw, (hidden, intermediate), dtype=jnp.float32) * 0.02
    bias = jax.random.normal(kb, (intermediate,), dtype=jnp.float32) * 0.02

    # --- main path (weight-stationary, exact GELU) ---
    out = bert_intermediate(hidden_states, weight, bias)
    jax.block_until_ready(out)
    assert out.shape == (batch, seq, intermediate)

    # Reference matching the kernel's bf16-operand / f32-accumulate numerics.
    x_bf = hidden_states.astype(jnp.bfloat16).astype(jnp.float32)
    w_bf = weight.astype(jnp.bfloat16).astype(jnp.float32)
    ref_bf16 = jax.nn.gelu(x_bf @ w_bf + bias, approximate=False)
    assert jnp.allclose(out, ref_bf16, atol=1e-3, rtol=1e-3)

    # Loose check against the pure-f32 PyTorch-equivalent reference
    # (bf16 operand cast is the only deliberate numeric deviation).
    ref_f32 = jax.nn.gelu(hidden_states @ weight + bias, approximate=False)
    assert jnp.allclose(out, ref_f32, atol=5e-2, rtol=5e-2)

    # --- ragged-M edge blocks (no wrapper pad/slice), forced small row tile ---
    hs2 = jax.random.normal(kx2, (3, 8, hidden), dtype=jnp.float32)   # M=24, tm=16
    out2 = bert_intermediate(hs2, weight, bias, tm=16)
    jax.block_until_ready(out2)
    x2_bf = hs2.astype(jnp.bfloat16).astype(jnp.float32)
    ref2 = jax.nn.gelu(x2_bf @ w_bf + bias, approximate=False)
    assert out2.shape == (3, 8, intermediate)
    assert jnp.allclose(out2, ref2, atol=1e-3, rtol=1e-3)

    # --- bf16 output knob (halves output HBM traffic for bf16 consumers) ---
    out_bf = bert_intermediate(hidden_states, weight, bias, out_dtype=jnp.bfloat16)
    jax.block_until_ready(out_bf)
    assert out_bf.dtype == jnp.bfloat16
    assert jnp.allclose(out_bf.astype(jnp.float32), ref_bf16, atol=1e-2, rtol=1e-2)

    print("KERNEL_OK")
</pallas_src>

<mosaic_0001>
module attributes {stable_mosaic.version = 11 : i64} {
  func.func @_bert_intermediate_kernel(%arg0: i32, %arg1: memref<16x32xf32, #tpu.memory_space<vmem>>, %arg2: memref<32x128xbf16, #tpu.memory_space<vmem>>, %arg3: memref<1x128xf32, #tpu.memory_space<vmem>>, %arg4: memref<16x128xf32, #tpu.memory_space<vmem>>) attributes {dimension_semantics = [#tpu.dimension_semantics<parallel>], iteration_bounds = array<i64: 1>, scalar_prefetch = 0 : i64, scratch_operands = 0 : i64, tpu.core_type = #tpu.core_type<tc>, window_params = [{transform_indices = @transform_0, window_bounds = array<i64: 16, 32>}, {pipeline_mode = #tpu.pipeline_mode<synchronous>, transform_indices = @transform_1, window_bounds = array<i64: 32, 128>}, {pipeline_mode = #tpu.pipeline_mode<synchronous>, transform_indices = @transform_2, window_bounds = array<i64: 1, 128>}, {transform_indices = @transform_3, window_bounds = array<i64: 16, 128>}]} {
    %c0 = arith.constant 0 : index
    %c0_0 = arith.constant 0 : index
    %0 = vector.load %arg1[%c0, %c0_0] : memref<16x32xf32, #tpu.memory_space<vmem>>, vector<16x32xf32>
    %1 = arith.truncf %0 : vector<16x32xf32> to vector<16x32xbf16>
    %c0_1 = arith.constant 0 : index
    %c0_2 = arith.constant 0 : index
    %2 = vector.load %arg2[%c0_1, %c0_2] : memref<32x128xbf16, #tpu.memory_space<vmem>>, vector<32x128xbf16>
    %cst = arith.constant dense<0.000000e+00> : vector<16x128xf32>
    %3 = tpu.matmul %1, %2, %cst {dimension_numbers = #tpu.dot_dimension_numbers<[1], [0], [0], [1], [0, 0, 1, 1], [], []>} : vector<16x32xbf16>, vector<32x128xbf16>, vector<16x128xf32> -> vector<16x128xf32>
    %c0_3 = arith.constant 0 : index
    %c0_4 = arith.constant 0 : index
    %4 = vector.load %arg3[%c0_3, %c0_4] : memref<1x128xf32, #tpu.memory_space<vmem>>, vector<1x128xf32>
    %5 = vector.broadcast %4 : vector<1x128xf32> to vector<16x128xf32>
    %6 = arith.addf %3, %5 : vector<16x128xf32>
    %cst_5 = arith.constant 0.707106769 : f32
    %7 = vector.broadcast %cst_5 : f32 to vector<16x128xf32>
    %8 = arith.mulf %6, %7 : vector<16x128xf32>
    %9 = math.erf %8 : vector<16x128xf32>
    %cst_6 = arith.constant 5.000000e-01 : f32
    %10 = vector.broadcast %cst_6 : f32 to vector<16x128xf32>
    %11 = arith.mulf %10, %9 : vector<16x128xf32>
    %cst_7 = arith.constant 5.000000e-01 : f32
    %12 = vector.broadcast %cst_7 : f32 to vector<16x128xf32>
    %13 = arith.addf %12, %11 : vector<16x128xf32>
    %14 = arith.mulf %6, %13 : vector<16x128xf32>
    %c0_8 = arith.constant 0 : index
    %c0_9 = arith.constant 0 : index
    %15 = vector.load %arg4[%c0_8, %c0_9] : memref<16x128xf32, #tpu.memory_space<vmem>>, vector<16x128xf32>
    tpu.vector_store %arg4[%c0_8, %c0_9], %14 {strides = array<i32>} : memref<16x128xf32, #tpu.memory_space<vmem>>, vector<16x128xf32>,
    return
  }
  func.func @transform_0(%arg0: i32) -> (i32, i32) {
    %c0_i32 = arith.constant 0 : i32
    %c0_i32_0 = arith.constant 0 : i32
    return %arg0, %c0_i32 : i32, i32
  }
  func.func @transform_1(%arg0: i32) -> (i32, i32) {
    %c0_i32 = arith.constant 0 : i32
    %c0_i32_0 = arith.constant 0 : i32
    %c0_i32_1 = arith.constant 0 : i32
    return %c0_i32, %c0_i32_0 : i32, i32
  }
  func.func @transform_2(%arg0: i32) -> (i32, i32) {
    %c0_i32 = arith.constant 0 : i32
    %c0_i32_0 = arith.constant 0 : i32
    %c0_i32_1 = arith.constant 0 : i32
    return %c0_i32, %c0_i32_0 : i32, i32
  }
  func.func @transform_3(%arg0: i32) -> (i32, i32) {
    %c0_i32 = arith.constant 0 : i32
    %c0_i32_0 = arith.constant 0 : i32
    return %arg0, %c0_i32 : i32, i32
  }
}

</mosaic_0001>

<llo_original>
// kernel: tpu_custom_call.1
$region0: #{tpu_custom_call.1}
  #allocation0 [shape = 'u32[]', space=smem, size = 0x4, offset = 0x4, fixed_abs, tag = 'smem constant byte address 0x4 - core index']
  #allocation1 [shape = 'u32[144,128]{1,0:T(1,128)}', space=vmem, size = 0x12000, scoped, tag = 'internal scratch']
  %s0 = inlined_call_operand.hbm [shape: f32[16,32], index: 0, kind: input, shape index: {}]
  %s1 = inlined_call_operand.hbm [shape: bf16[32,128], index: 1, kind: input, shape index: {}]
  %s2 = inlined_call_operand.vmem [shape: f32[1,128], index: 2, kind: input, shape index: {}]
  %s3 = inlined_call_operand.hbm [shape: f32[16,128], index: 3, kind: output, shape index: {}]
  %s4 = sld [smem:[#allocation0]]
  $region30: #{tpu_custom_call.1} parent=0
    _
  %s6 = ssub.s32 1, %s4
  %s7 = scalar_select 0, %s6, %s4
  $region1: #{tpu_custom_call.1} parent=0
    #allocation2 [shape = 'u8[8192]{0}', space=vmem, size = 0x2000, scoped, tag = 'input window, operand 0, single buffered']
    #allocation3 [shape = 's32[1]{0}', space=sflag, size = 0x4, scoped, tag = 'scoped memory for tpu_custom_call.1']
    #allocation4 [shape = 's32[1]{0}', space=sflag, size = 0x4, scoped, tag = 'scoped memory for tpu_custom_call.1']
    #allocation5 [shape = 'u8[8192]{0}', space=vmem, size = 0x2000, scoped, tag = 'input window, operand 1, single buffered']
    #allocation6 [shape = 's32[1]{0}', space=sflag, size = 0x4, scoped, tag = 'scoped memory for tpu_custom_call.1']
    #allocation7 [shape = 'u8[8192]{0}', space=vmem, size = 0x2000, scoped, tag = 'output window, operand 0, single buffered']
    %8 = vsyncpa [#allocation3], 0
    %9 = vsyncpa [#allocation6], 0
    %10 = vsyncpa [#allocation4], 0
    // Predicated region
    $region2: #{tpu_custom_call.1} parent=1 // pred_check
      _
    $region3: #{tpu_custom_call.1} parent=1 // pred_check_branch
      %12 = sbr.rel (0) target = $region5
    $region4: #{tpu_custom_call.1} parent=1 // pred_region
      %s14 = ssub.s32 256, 256
      %15 = vsyncadd [#allocation3], %s14
      %s16 = sshll.u32 [#allocation2], 4
      %s17 = int_to_ptr.vmem [resolvable:$true] %s16
      %22 = dma.hbm_to_vmem [thread:$0]  %s0, 256, %s17, [#allocation3], 128, 128, 8
    $region5: #{tpu_custom_call.1} parent=1 // pred_fallthru
      _
    // Predicated region
    $region6: #{tpu_custom_call.1} parent=1 // pred_check
      _
    $region7: #{tpu_custom_call.1} parent=1 // pred_check_branch
      %24 = sbr.rel (0) target = $region9
    $region8: #{tpu_custom_call.1} parent=1 // pred_region
      %s26 = ssub.s32 256, 256
      %27 = vsyncadd [#allocation6], %s26
      %s28 = sshll.u32 [#allocation5], 4
      %s29 = int_to_ptr.vmem [resolvable:$true] %s28
      %34 = dma.hbm_to_vmem [thread:$0]  %s1, 256, %s29, [#allocation6], 64, 64, 4
    $region9: #{tpu_custom_call.1} parent=1 // pred_fallthru
      _
    // Predicated region
    $region10: #{tpu_custom_call.1} parent=1 // pred_check
      _
    $region11: #{tpu_custom_call.1} parent=1 // pred_check_branch
      %36 = sbr.rel (0) target = $region13
    $region12: #{tpu_custom_call.1} parent=1 // pred_region
      _
    $region13: #{tpu_custom_call.1} parent=1 // pred_fallthru
      _
    // Predicated region
    $region14: #{tpu_custom_call.1} parent=1 // pred_check
      _
    $region15: #{tpu_custom_call.1} parent=1 // pred_check_branch
      %38 = sbr.rel (0) target = $region17
    $region16: #{tpu_custom_call.1} parent=1 // pred_region
      %39 = dma.done [#allocation3], 256
    $region17: #{tpu_custom_call.1} parent=1 // pred_fallthru
      _
    // Predicated region
    $region18: #{tpu_custom_call.1} parent=1 // pred_check
      _
    $region19: #{tpu_custom_call.1} parent=1 // pred_check_branch
      %41 = sbr.rel (0) target = $region21
    $region20: #{tpu_custom_call.1} parent=1 // pred_region
      %42 = dma.done [#allocation6], 256
    $region21: #{tpu_custom_call.1} parent=1 // pred_fallthru
      _
    %v44 = vld [vmem:[#allocation2] sm:$0xff]
    %v45 = vld [vmem:[#allocation2 + $0x8] sm:$0xff]
    %v46 = vpack.c.bf16 %v45, %v44
    %v47 = vld [vmem:[#allocation5] sm:$0xf]
    %v48 = vld [vmem:[#allocation5 + $0x4] sm:$0xf]
    %v49 = vld [vmem:[#allocation5 + $0x8] sm:$0xf]
    %v50 = vld [vmem:[#allocation5 + $0xc] sm:$0xf]
    %v51 = vld [vmem:[%s2] sm:$0x1]
    %v53 = vlaneseq
    %v54 = vshrl.u32 %v53, 7
    %v55 = vsub.s32 0, %v54
    %v56 = vrot.slane %v51, %v55
    %v62 = vunpack.c.l.b16 %v47
    %v63 = vunpack.c.l.b16 %v48
    %v64 = vunpack.c.l.b16 %v49
    %v65 = vunpack.c.l.b16 %v50
    %v66 = vpack.c.b16 %v63, %v62
    %v67 = vpack.c.b16 %v65, %v64
    %vm70 = vcmask 261120
    %v72 = vsel %vm70, %v46, 0
    %74 = vmatprep.subr.bf16.mxu0 0
    %75 = vmatpush1.bf16.msra.mxu0 %v66
    %76 = vmatprep.subr.bf16.mxu0 0
    %77 = vmatpush1.bf16.msra.mxu0 %v67
    %78 = vmatprep.subr.bf16.mxu0 0
    %79 = vmatpush1.bf16.msra.mxu0 0
    %80 = vmatprep.subr.bf16.mxu0 0
    %81 = vmatpush1.bf16.msra.mxu0 0
    %82 = vmatprep.subr.bf16.mxu0 0
    %83 = vmatpush1.bf16.msra.mxu0 0
    %84 = vmatprep.subr.bf16.mxu0 0
    %85 = vmatpush1.bf16.msra.mxu0 0
    %86 = vmatprep.subr.bf16.mxu0 0
    %87 = vmatpush1.bf16.msra.mxu0 0
    %88 = vmatprep.subr.bf16.mxu0 0
    %89 = vmatpush1.bf16.msra.mxu0 0
    %90 = vmatprep.subr.bf16.mxu0 0
    %91 = vmatpush1.bf16.msra.mxu0 0
    %92 = vmatprep.subr.bf16.mxu0 0
    %93 = vmatpush1.bf16.msra.mxu0 0
    %94 = vmatprep.subr.bf16.mxu0 0
    %95 = vmatpush1.bf16.msra.mxu0 0
    %96 = vmatprep.subr.bf16.mxu0 0
    %97 = vmatpush1.bf16.msra.mxu0 0
    %98 = vmatprep.subr.bf16.mxu0 0
    %99 = vmatpush1.bf16.msra.mxu0 0
    %100 = vmatprep.subr.bf16.mxu0 0
    %101 = vmatpush1.bf16.msra.mxu0 0
    %102 = vmatprep.subr.bf16.mxu0 0
    %103 = vmatpush1.bf16.msra.mxu0 0
    %104 = vmatprep.subr.bf16.mxu0 0
    %105 = vmatpush1.bf16.msra.mxu0 0
    %106 = vmatprep.mubr.bf16.mxu0 0
    %107 = vmatmul.mubr.bf16.gmra.mrb[0].mxu0 %v72
    %v108 = vpop.f32.mrb[0].mxu0
    %v109 = vadd.f32 %v56, %v108
    %v110 = vpop.f32.mrb[0].mxu0
    %v111 = vpop.f32.mrb[0].mxu0
    %v112 = vadd.f32 %v56, %v111
    %v113 = vpop.f32.mrb[0].mxu0
    %114 = vdwg.mxu0
    %v115 = vmul.f32 %v109, 0.70710677
    %v116 = vmul.f32 %v112, 0.70710677
    %v117 = verf.f32.pop %v115
    %v118 = verf.f32.pop %v116
    %v119 = vmul.f32 %v117, 0.5
    %v120 = vmul.f32 %v118, 0.5
    %v121 = vadd.f32 %v119, 0.5
    %v122 = vadd.f32 %v120, 0.5
    %v123 = vmul.f32 %v109, %v121
    %v124 = vmul.f32 %v112, %v122
    %125 = vst [vmem:[#allocation7] sm:$0xff] %v123
    %126 = vst [vmem:[#allocation7 + $0x8] sm:$0xff] %v124
    // Predicated region
    $region22: #{tpu_custom_call.1} parent=1 // pred_check
      _
    $region23: #{tpu_custom_call.1} parent=1 // pred_check_branch
      %128 = sbr.rel (0) target = $region25
    $region24: #{tpu_custom_call.1} parent=1 // pred_region
      %s130 = ssub.s32 256, 256
      %131 = vsyncadd [#allocation4], %s130
      %s132 = sshll.u32 [#allocation7], 4
      %s133 = int_to_ptr.vmem [resolvable:$true] %s132
      %138 = dma.vmem_to_hbm [thread:$0]  %s133, 256, %s3, [#allocation4], 128, 128, 8
    $region25: #{tpu_custom_call.1} parent=1 // pred_fallthru
      _
    // Predicated region
    $region26: #{tpu_custom_call.1} parent=1 // pred_check
      _
    $region27: #{tpu_custom_call.1} parent=1 // pred_check_branch
      %140 = sbr.rel (0) target = $region29
    $region28: #{tpu_custom_call.1} parent=1 // pred_region
      %141 = dma.done [#allocation4], 256
    $region29: #{tpu_custom_call.1} parent=1 // pred_fallthru
      _
    %142 = vsyncpa [#allocation3], 1
    %143 = vsyncpa [#allocation6], 1
    %144 = vsyncpa [#allocation4], 1

</llo_original>
